<compile_context>
chip_gen: v7x
topology: tpu7x:2x2x1
jax: 0.10.0
libtpu: 0.0.40
codegen_flags: <defaults>
</compile_context>

<pallas_src>
import jax
import jax.numpy as jnp
import numpy as np
from jax.experimental import pallas as pl
from jax.experimental.pallas import tpu as pltpu


def _round_up(x, m):
    return ((x + m - 1) // m) * m


def _pick_row_tile(r):
    """Row tile for the (cls + patches) axis.  Returns (TM, num_tiles)."""
    if r <= 128:
        return r, 1                      # block == full dim: always layout-legal
    tm = 128 if r <= 512 else 256
    return tm, -(-r // tm)               # cdiv; last block may be partial


def patchembed_sub_forward(x, weight, bias, cls_token, pos_embed, *,
                           patch_size, emb_choice, super_embed_dim,
                           out_dtype=jnp.float32):
    """x: (B, C, H, W) float32 NCHW.  Returns (B, N+1, super_embed_dim)."""
    B, C, H, W = x.shape
    ph = pw = patch_size
    assert H % ph == 0 and W % pw == 0
    Hp, Wp = H // ph, W // pw
    N = Hp * Wp
    K = C * ph * pw
    E_full = super_embed_dim
    e = emb_choice

    # Kernel compute width: emb_choice rounded up to 128 lanes; if the zero
    # tail would be narrower than 128 lanes, fold it into the matmul instead
    # of emitting a masked tail store.
    E_k = _round_up(e, 128)
    if E_k >= E_full or (E_full - E_k) < 128:
        E_k = E_full

    R = N + 1                            # cls row + patch rows
    TM, MT = _pick_row_tile(R)
    R_pad = TM * MT                      # add-table rows (>= R, tile aligned)

    # --- parameters: slice, fold bias/cls/pos into one additive table -------
    w_s = weight[:e].reshape(e, K).T.astype(jnp.bfloat16)          # (K, e)
    w_pad = jnp.zeros((K, E_k), jnp.bfloat16).at[:, :e].set(w_s)

    add = jnp.zeros((R_pad, E_k), jnp.float32)
    add = add.at[0, :e].set(cls_token[0, 0, :e] + pos_embed[0, 0, :e])
    add = add.at[1:R, :e].set(bias[:e][None, :] + pos_embed[0, 1:, :e])

    # --- im2col: cast to bf16 FIRST, then reorder; zero row 0 stands in for
    #     the cls token (zero_row @ W + add[0] == cls + pos[0]).
    xb = x.astype(jnp.bfloat16)
    patches = xb.reshape(B, C, Hp, ph, Wp, pw).transpose(0, 2, 4, 1, 3, 5)
    patches = patches.reshape(B, N, K)
    patches = jnp.pad(patches, ((0, 0), (1, 0), (0, 0)))            # (B, R, K)

    def kernel(p_ref, w_ref, add_ref, o_ref):
        # p_ref:   (1, TM, K)     bf16  row tile (row 0 of batch = zero cls row)
        # w_ref:   (K, E_k)       bf16  constant across the grid
        # add_ref: (R_pad, E_k)   f32   grid-resident bias/cls/pos table
        # o_ref:   (1, TM, E_full)      per-tile output block
        y = jnp.dot(p_ref[0], w_ref[...], preferred_element_type=jnp.float32)
        if MT == 1:
            y = y + add_ref[...]
        else:
            start = pl.multiple_of(pl.program_id(1) * TM, TM)
            y = y + add_ref[pl.ds(start, TM), :]
        y = y.astype(o_ref.dtype)
        if E_k == E_full:
            o_ref[0, :, :] = y
        else:
            o_ref[0, :, :E_k] = y
            o_ref[0, :, E_k:] = jnp.zeros((TM, E_full - E_k), o_ref.dtype)

    out_isz = jnp.dtype(out_dtype).itemsize
    vmem_est = (2 * TM * K * 2            # patches block, double-buffered, bf16
                + 2 * K * E_k * 2         # weight (2 bufs even with const map)
                + 2 * R_pad * E_k * 4     # grid-resident add table
                + 2 * TM * E_full * out_isz
                + (1 << 20))              # headroom
    vmem_limit = int(min(max(vmem_est, 16 << 20), 48 << 20))

    out = pl.pallas_call(
        kernel,
        out_shape=jax.ShapeDtypeStruct((B, R, E_full), out_dtype),
        grid_spec=pltpu.PrefetchScalarGridSpec(
            num_scalar_prefetch=0,
            grid=(B, MT),
            in_specs=[
                pl.BlockSpec((1, TM, K), lambda b, m: (b, m, 0)),
                pl.BlockSpec((K, E_k), lambda b, m: (0, 0)),
                pl.BlockSpec((R_pad, E_k), lambda b, m: (0, 0)),
            ],
            out_specs=pl.BlockSpec((1, TM, E_full), lambda b, m: (b, m, 0)),
        ),
        compiler_params=pltpu.CompilerParams(
            dimension_semantics=("parallel", "parallel"),
            vmem_limit_bytes=vmem_limit),
    )(patches, w_pad, add)
    return out


def _reference(x, weight, bias, cls_token, pos_embed, *,
               patch_size, emb_choice, super_embed_dim):
    """Pure-JAX f32 mirror of the PyTorch forward (eval, scale=False, abs_pos=True)."""
    B = x.shape[0]
    e = emb_choice
    w_s, b_s = weight[:e], bias[:e]
    cls_s, pos_s = cls_token[..., :e], pos_embed[..., :e]
    y = jax.lax.conv_general_dilated(
        x, w_s, window_strides=(patch_size, patch_size), padding="VALID",
        dimension_numbers=("NCHW", "OIHW", "NCHW"))
    y = y + b_s[None, :, None, None]
    y = y.reshape(B, e, -1).transpose(0, 2, 1)            # flatten(2).transpose(1,2)
    y = jnp.concatenate([jnp.broadcast_to(cls_s, (B, 1, e)), y], axis=1)
    y = y + pos_s
    # dropout: identity in eval mode
    y = jnp.pad(y, ((0, 0), (0, 0), (0, super_embed_dim - e)))
    return y


if __name__ == "__main__":
    # Small, shape-consistent config.
    B, C, H, W = 2, 4, 16, 16
    patch_size = 8
    super_embed_dim = 32
    emb_choice = 24
    N = (H // patch_size) * (W // patch_size)

    key = jax.random.PRNGKey(0)
    k_x, k_w, k_b, k_c, k_p = jax.random.split(key, 5)
    x = jax.random.normal(k_x, (B, C, H, W), jnp.float32)
    weight = jax.random.normal(k_w, (super_embed_dim, C, patch_size, patch_size), jnp.float32) * 0.05
    bias = jax.random.normal(k_b, (super_embed_dim,), jnp.float32) * 0.05
    cls_token = jax.random.normal(k_c, (1, 1, super_embed_dim), jnp.float32) * 0.02
    pos_embed = jax.random.normal(k_p, (1, N + 1, super_embed_dim), jnp.float32) * 0.02

    out = patchembed_sub_forward(
        x, weight, bias, cls_token, pos_embed,
        patch_size=patch_size, emb_choice=emb_choice, super_embed_dim=super_embed_dim)
    out = jax.block_until_ready(out)

    ref = _reference(
        x, weight, bias, cls_token, pos_embed,
        patch_size=patch_size, emb_choice=emb_choice, super_embed_dim=super_embed_dim)

    # bf16 MXU inputs with f32 accumulation -> loose tolerance vs. the f32 conv.
    np.testing.assert_allclose(np.asarray(out), np.asarray(ref), rtol=3e-2, atol=3e-2)
    print("KERNEL_OK")
</pallas_src>

<mosaic_0001>
module attributes {stable_mosaic.version = 11 : i64} {
  func.func @kernel(%arg0: i32, %arg1: i32, %arg2: memref<1x5x256xbf16, #tpu.memory_space<vmem>>, %arg3: memref<256x32xbf16, #tpu.memory_space<vmem>>, %arg4: memref<5x32xf32, #tpu.memory_space<vmem>>, %arg5: memref<1x5x32xf32, #tpu.memory_space<vmem>>) attributes {dimension_semantics = [#tpu.dimension_semantics<parallel>, #tpu.dimension_semantics<parallel>], iteration_bounds = array<i64: 2, 1>, scalar_prefetch = 0 : i64, scratch_operands = 0 : i64, tpu.core_type = #tpu.core_type<tc>, window_params = [{transform_indices = @transform_0, window_bounds = array<i64: 1, 5, 256>}, {pipeline_mode = #tpu.pipeline_mode<synchronous>, transform_indices = @transform_1, window_bounds = array<i64: 256, 32>}, {pipeline_mode = #tpu.pipeline_mode<synchronous>, transform_indices = @transform_2, window_bounds = array<i64: 5, 32>}, {transform_indices = @transform_3, window_bounds = array<i64: 1, 5, 32>}]} {
    %c0 = arith.constant 0 : index
    %c0_0 = arith.constant 0 : index
    %c0_1 = arith.constant 0 : index
    %0 = vector.load %arg2[%c0, %c0_0, %c0_1] : memref<1x5x256xbf16, #tpu.memory_space<vmem>>, vector<1x5x256xbf16>
    %1 = vector.shape_cast %0 : vector<1x5x256xbf16> to vector<5x256xbf16>
    %c0_2 = arith.constant 0 : index
    %c0_3 = arith.constant 0 : index
    %2 = vector.load %arg3[%c0_2, %c0_3] : memref<256x32xbf16, #tpu.memory_space<vmem>>, vector<256x32xbf16>
    %cst = arith.constant dense<0.000000e+00> : vector<5x32xf32>
    %3 = tpu.matmul %1, %2, %cst {dimension_numbers = #tpu.dot_dimension_numbers<[1], [0], [0], [1], [0, 0, 1, 1], [], []>} : vector<5x256xbf16>, vector<256x32xbf16>, vector<5x32xf32> -> vector<5x32xf32>
    %c0_4 = arith.constant 0 : index
    %c0_5 = arith.constant 0 : index
    %4 = vector.load %arg4[%c0_4, %c0_5] : memref<5x32xf32, #tpu.memory_space<vmem>>, vector<5x32xf32>
    %5 = arith.addf %3, %4 : vector<5x32xf32>
    %c0_6 = arith.constant 0 : index
    %c0_7 = arith.constant 0 : index
    %c0_8 = arith.constant 0 : index
    %6 = vector.load %arg5[%c0_6, %c0_7, %c0_8] : memref<1x5x32xf32, #tpu.memory_space<vmem>>, vector<1x5x32xf32>
    %7 = vector.shape_cast %6 : vector<1x5x32xf32> to vector<5x32xf32>
    %8 = vector.shape_cast %5 : vector<5x32xf32> to vector<1x5x32xf32>
    tpu.vector_store %arg5[%c0_6, %c0_7, %c0_8], %8 {strides = array<i32>} : memref<1x5x32xf32, #tpu.memory_space<vmem>>, vector<1x5x32xf32>,
    return
  }
  func.func @transform_0(%arg0: i32, %arg1: i32) -> (i32, i32, i32) {
    %c0_i32 = arith.constant 0 : i32
    %c0_i32_0 = arith.constant 0 : i32
    return %arg0, %arg1, %c0_i32 : i32, i32, i32
  }
  func.func @transform_1(%arg0: i32, %arg1: i32) -> (i32, i32) {
    %c0_i32 = arith.constant 0 : i32
    %c0_i32_0 = arith.constant 0 : i32
    %c0_i32_1 = arith.constant 0 : i32
    return %c0_i32, %c0_i32_0 : i32, i32
  }
  func.func @transform_2(%arg0: i32, %arg1: i32) -> (i32, i32) {
    %c0_i32 = arith.constant 0 : i32
    %c0_i32_0 = arith.constant 0 : i32
    %c0_i32_1 = arith.constant 0 : i32
    return %c0_i32, %c0_i32_0 : i32, i32
  }
  func.func @transform_3(%arg0: i32, %arg1: i32) -> (i32, i32, i32) {
    %c0_i32 = arith.constant 0 : i32
    %c0_i32_0 = arith.constant 0 : i32
    return %arg0, %arg1, %c0_i32 : i32, i32, i32
  }
}

</mosaic_0001>

<llo_original>
// kernel: tpu_custom_call.1
$region0: #{tpu_custom_call.1}
  #allocation0 [shape = 'u32[]', space=smem, size = 0x4, offset = 0x4, fixed_abs, tag = 'smem constant byte address 0x4 - core index']
  #allocation1 [shape = 'u32[144,128]{1,0:T(1,128)}', space=vmem, size = 0x12000, scoped, tag = 'internal scratch']
  %s0 = inlined_call_operand.vmem [shape: bf16[2,5,256], index: 0, kind: input, shape index: {}]
  %s1 = inlined_call_operand.vmem [shape: bf16[256,32], index: 1, kind: input, shape index: {}]
  %s2 = inlined_call_operand.vmem [shape: f32[5,32], index: 2, kind: input, shape index: {}]
  %s3 = inlined_call_operand.vmem [shape: f32[2,5,32], index: 3, kind: output, shape index: {}]
  %s4 = sld [smem:[#allocation0]]
  $region45: #{tpu_custom_call.1} parent=0
    _
  %s6 = ssub.s32 1, %s4
  %s7 = scalar_select 0, %s6, %s4
  loop: start=0, step=1, limit=4
  $region2: #{tpu_custom_call.1} parent=0 // loop_pre_header
    _
  $region3: #{tpu_custom_call.1} parent=0 // loop_header
    %s9 = sphi 0, %s13
    %p10 = scmp.ge.s32.totalorder %s9, 4
    %s16 = sphi 0, %s28
    %s17 = sphi 0, %s24
    %s18 = sphi 0, %s16
    %s19 = sphi 0, %s17
    %s20 = sphi 0, %s18
    %s21 = sphi 0, %s19
    %s33 = sphi 0, %s35
    %s36 = sphi 0, %s33
    %s37 = sphi 0, %s36
    %s53 = sphi 0, %s37
    %s57 = sphi 0, %s57
    %s59 = sphi 0, %s57
    %s60 = sphi 0, %s59
    %s74 = sphi 0, %s60
    %s78 = sphi 0, %s78
    %s80 = sphi 0, %s78
    %s81 = sphi 0, %s80
    %s95 = sphi 0, %s81
    %s103 = sphi 0, %s105
    %s106 = sphi 0, %s103
    %s107 = sphi 0, %s106
    %s123 = sphi 0, %s107
  $region4: #{tpu_custom_call.1} parent=0 // loop_header_branch
    %12 = sbr.rel (%p10) target = $region8
  $region5: #{tpu_custom_call.1} parent=0 // loop_body
    %s14 = ssub.s32 %s9, 1
    %s15 = ssub.s32 %s9, 2
    %s22 = sadd.s32 1, %s17
    %p23 = scmp.ge.s32.totalorder %s22, 1
    %s24 = scalar_select %p23, 0, %s22
    %s25 = sadd.s32 1, %s16
    %s26 = scalar_select %p23, %s25, %s16
    %p27 = scmp.ge.s32.totalorder %s26, 2
    %s28 = scalar_select %p27, 0, %s26
    %s29 = ssub.s32 %s16, %s28
    %s30 = ssub.s32 %s17, %s24
    %s31 = sor.u32 %s29, %s30
    %p32 = scmp.eq.s32.totalorder %s31, 0
    %s34 = sadd.s32 %s33, 1
    %s35 = scalar_select %p32, %s33, %s34
    %p38 = pneg %p32
    %p39 = scmp.eq.s32.totalorder %s9, 1
    %p40 = por %p38, %p39
    %p41 = scmp.ne.s32.totalorder %s33, %s36
    %p42 = scmp.eq.s32.totalorder %s9, 0
    %p43 = por %p41, %p42
    %p44 = scmp.ne.s32.totalorder %s33, %s36
    %p45 = scmp.eq.s32.totalorder %s14, 1
    %p46 = por %p44, %p45
    %p47 = scmp.ne.s32.totalorder %s36, %s37
    %p48 = scmp.eq.s32.totalorder %s14, 0
    %p49 = por %p47, %p48
    %p50 = scmp.ne.s32.totalorder %s36, %s37
    %p51 = scmp.eq.s32.totalorder %s15, 1
    %p52 = por %p50, %p51
    %p54 = scmp.ne.s32.totalorder %s37, %s53
    %p55 = scmp.eq.s32.totalorder %s15, 0
    %p56 = por %p54, %p55
    %s58 = sadd.s32 %s57, 1
    %p61 = scmp.eq.s32.totalorder %s9, 1
    %p62 = scmp.ne.s32.totalorder %s57, %s59
    %p63 = scmp.eq.s32.totalorder %s9, 0
    %p64 = por %p62, %p63
    %p65 = scmp.ne.s32.totalorder %s57, %s59
    %p66 = scmp.eq.s32.totalorder %s14, 1
    %p67 = por %p65, %p66
    %p68 = scmp.ne.s32.totalorder %s59, %s60
    %p69 = scmp.eq.s32.totalorder %s14, 0
    %p70 = por %p68, %p69
    %p71 = scmp.ne.s32.totalorder %s59, %s60
    %p72 = scmp.eq.s32.totalorder %s15, 1
    %p73 = por %p71, %p72
    %p75 = scmp.ne.s32.totalorder %s60, %s74
    %p76 = scmp.eq.s32.totalorder %s15, 0
    %p77 = por %p75, %p76
    %s79 = sadd.s32 %s78, 1
    %p82 = scmp.eq.s32.totalorder %s9, 1
    %p83 = scmp.ne.s32.totalorder %s78, %s80
    %p84 = scmp.eq.s32.totalorder %s9, 0
    %p85 = por %p83, %p84
    %p86 = scmp.ne.s32.totalorder %s78, %s80
    %p87 = scmp.eq.s32.totalorder %s14, 1
    %p88 = por %p86, %p87
    %p89 = scmp.ne.s32.totalorder %s80, %s81
    %p90 = scmp.eq.s32.totalorder %s14, 0
    %p91 = por %p89, %p90
    %p92 = scmp.ne.s32.totalorder %s80, %s81
    %p93 = scmp.eq.s32.totalorder %s15, 1
    %p94 = por %p92, %p93
    %p96 = scmp.ne.s32.totalorder %s81, %s95
    %p97 = scmp.eq.s32.totalorder %s15, 0
    %p98 = por %p96, %p97
    %s99 = ssub.s32 %s16, %s28
    %s100 = ssub.s32 %s17, %s24
    %s101 = sor.u32 %s99, %s100
    %p102 = scmp.eq.s32.totalorder %s101, 0
    %s104 = sadd.s32 %s103, 1
    %s105 = scalar_select %p102, %s103, %s104
    %p108 = pneg %p102
    %p109 = scmp.eq.s32.totalorder %s9, 1
    %p110 = por %p108, %p109
    %p111 = scmp.ne.s32.totalorder %s103, %s106
    %p112 = scmp.eq.s32.totalorder %s9, 0
    %p113 = por %p111, %p112
    %p114 = scmp.ne.s32.totalorder %s103, %s106
    %p115 = scmp.eq.s32.totalorder %s14, 1
    %p116 = por %p114, %p115
    %p117 = scmp.ne.s32.totalorder %s106, %s107
    %p118 = scmp.eq.s32.totalorder %s14, 0
    %p119 = por %p117, %p118
    %p120 = scmp.ne.s32.totalorder %s106, %s107
    %p121 = scmp.eq.s32.totalorder %s15, 1
    %p122 = por %p120, %p121
    %p124 = scmp.ne.s32.totalorder %s107, %s123
    %p125 = scmp.eq.s32.totalorder %s15, 0
    %p126 = por %p124, %p125
    %p127 = scmp.le.s32.totalorder 1, %s9
    %p128 = scmp.lt.s32.totalorder %s9, 3
    %p129 = pnand %p127, %p128
    %p130 = pneg %p129
    // Predicated region
    $region9: #{tpu_custom_call.1} parent=5 // pred_check
      _
    $region10: #{tpu_custom_call.1} parent=5 // pred_check_branch
      %132 = sbr.rel (%p129) target = $region12
    $region11: #{tpu_custom_call.1} parent=5 // pred_region
      %s133 = ssub.s32 %s9, 1
      // Predicated region
      $region13: #{tpu_custom_call.1} parent=11 // pred_check
        %p134 = pneg %p70
      $region14: #{tpu_custom_call.1} parent=11 // pred_check_branch
        %136 = sbr.rel (%p134) target = $region16
      $region15: #{tpu_custom_call.1} parent=11 // pred_region
        _
      $region16: #{tpu_custom_call.1} parent=11 // pred_fallthru
        _
      // Predicated region
      $region17: #{tpu_custom_call.1} parent=11 // pred_check
        %p137 = pneg %p91
      $region18: #{tpu_custom_call.1} parent=11 // pred_check_branch
        %139 = sbr.rel (%p137) target = $region20
      $region19: #{tpu_custom_call.1} parent=11 // pred_region
        _
      $region20: #{tpu_custom_call.1} parent=11 // pred_fallthru
        _
    $region12: #{tpu_custom_call.1} parent=5 // pred_fallthru
      _
    %p140 = scmp.lt.s32.totalorder %s9, 2
    // Predicated region
    $region21: #{tpu_custom_call.1} parent=5 // pred_check
      %p141 = pneg %p140
    $region22: #{tpu_custom_call.1} parent=5 // pred_check_branch
      %143 = sbr.rel (%p141) target = $region24
    $region23: #{tpu_custom_call.1} parent=5 // pred_region
      // Predicated region
      $region25: #{tpu_custom_call.1} parent=23 // pred_check
        %p144 = pneg %p43
      $region26: #{tpu_custom_call.1} parent=23 // pred_check_branch
        %146 = sbr.rel (%p144) target = $region28
      $region27: #{tpu_custom_call.1} parent=23 // pred_region
        %p147 = scmp.lt.s32.totalorder %s16, 1
        %s148 = scalar_select %p147, %s16, 1
        %p149 = scmp.lt.s32.totalorder %s17, 0
        %s150 = scalar_select %p149, %s17, 0
        %s151 = smul.addr %s150, 2
        %s152 = smul.addr %s148, 2
        %s153 = sadd.s32 %s151, %s152
        %s154 = smul.addr %s153, 4
        %s155 = scalar_lea.vmem %s0, %s154
      $region28: #{tpu_custom_call.1} parent=23 // pred_fallthru
        _
    $region24: #{tpu_custom_call.1} parent=5 // pred_fallthru
      _
    %p156 = scmp.le.s32.totalorder 1, %s9
    %p157 = scmp.lt.s32.totalorder %s9, 3
    %p158 = pnand %p156, %p157
    %p159 = pneg %p158
    // Predicated region
    $region29: #{tpu_custom_call.1} parent=5 // pred_check
      _
    $region30: #{tpu_custom_call.1} parent=5 // pred_check_branch
      %161 = sbr.rel (%p158) target = $region32
    $region31: #{tpu_custom_call.1} parent=5 // pred_region
      %s162 = ssub.s32 %s9, 1
      %p163 = scmp.lt.s32.totalorder %s18, 1
      %s164 = scalar_select %p163, %s18, 1
      %p165 = scmp.lt.s32.totalorder %s19, 0
      %s166 = scalar_select %p165, %s19, 0
      %s167 = smul.addr %s166, 2
      %s168 = smul.addr %s164, 2
      %s169 = sadd.s32 %s167, %s168
      %s170 = smul.addr %s169, 4
      %s171 = scalar_lea.vmem %s0, %s170
      %p172 = pneg %p49
      %p173 = pneg %p46
      %p174 = pneg %p70
      %p175 = pneg %p67
      %p176 = pneg %p91
      %p177 = pneg %p88
      %p178 = pneg %p119
      %p179 = pneg %p116
      %p180 = scmp.lt.s32.totalorder %s18, 1
      %s181 = scalar_select %p180, %s18, 1
      %p182 = scmp.lt.s32.totalorder %s19, 0
      %s183 = scalar_select %p182, %s19, 0
      %s184 = sadd.s32 %s183, %s181
      %s185 = smul.addr %s184, 8
      %s186 = scalar_lea.vmem %s3, %s185
      %p187 = scmp.lt.s32.totalorder %s18, 1
      %s188 = scalar_select %p187, %s18, 1
      %p189 = scmp.lt.s32.totalorder %s19, 0
      %s190 = scalar_select %p189, %s19, 0
      %s191 = smul.addr %s190, 2
      %s192 = smul.addr %s188, 2
      %s193 = sadd.s32 %s191, %s192
      %s194 = smul.addr %s193, 4
      %s195 = scalar_lea.vmem %s0, %s194
      %p196 = scmp.lt.s32.totalorder %s18, 1
      %s197 = scalar_select %p196, %s18, 1
      %p198 = scmp.lt.s32.totalorder %s19, 0
      %s199 = scalar_select %p198, %s19, 0
      %s200 = sadd.s32 %s199, %s197
      %s201 = smul.addr %s200, 8
      %s202 = scalar_lea.vmem %s3, %s201
      %v204 = vld [vmem:[%s195] sm:$0x77]
      %v205 = vld [vmem:[%s1] sm:$0xf]
      %v206 = vld [vmem:[%s1 + $0x4] sm:$0xf]
      %v207 = vld [vmem:[%s1 + $0x8] sm:$0xf]
      %v208 = vld [vmem:[%s1 + $0xc] sm:$0xf]
      %v209 = vld [vmem:[%s1 + $0x10] sm:$0xf]
      %v210 = vld [vmem:[%s1 + $0x14] sm:$0xf]
      %v211 = vld [vmem:[%s1 + $0x18] sm:$0xf]
      %v212 = vld [vmem:[%s1 + $0x1c] sm:$0xf]
      %v213 = vld [vmem:[%s1 + $0x20] sm:$0xf]
      %v214 = vld [vmem:[%s1 + $0x24] sm:$0xf]
      %v215 = vld [vmem:[%s1 + $0x28] sm:$0xf]
      %v216 = vld [vmem:[%s1 + $0x2c] sm:$0xf]
      %v217 = vld [vmem:[%s1 + $0x30] sm:$0xf]
      %v218 = vld [vmem:[%s1 + $0x34] sm:$0xf]
      %v219 = vld [vmem:[%s1 + $0x38] sm:$0xf]
      %v220 = vld [vmem:[%s1 + $0x3c] sm:$0xf]
      %v221 = vld [vmem:[%s1 + $0x40] sm:$0xf]
      %v222 = vld [vmem:[%s1 + $0x44] sm:$0xf]
      %v223 = vld [vmem:[%s1 + $0x48] sm:$0xf]
      %v224 = vld [vmem:[%s1 + $0x4c] sm:$0xf]
      %v225 = vld [vmem:[%s1 + $0x50] sm:$0xf]
      %v226 = vld [vmem:[%s1 + $0x54] sm:$0xf]
      %v227 = vld [vmem:[%s1 + $0x58] sm:$0xf]
      %v228 = vld [vmem:[%s1 + $0x5c] sm:$0xf]
      %v229 = vld [vmem:[%s1 + $0x60] sm:$0xf]
      %v230 = vld [vmem:[%s1 + $0x64] sm:$0xf]
      %v231 = vld [vmem:[%s1 + $0x68] sm:$0xf]
      %v232 = vld [vmem:[%s1 + $0x6c] sm:$0xf]
      %v233 = vld [vmem:[%s1 + $0x70] sm:$0xf]
      %v234 = vld [vmem:[%s1 + $0x74] sm:$0xf]
      %v235 = vld [vmem:[%s1 + $0x78] sm:$0xf]
      %v236 = vld [vmem:[%s1 + $0x7c] sm:$0xf]
      %v237 = vld [vmem:[%s2] sm:$0x1f]
      %v239 = vunpack.c.l.b16 %v204
      %v240 = vunpack.c.h.b16 %v204
      %v241 = vpack.c.b16 %v239, %v239
      %v242 = vpack.c.b16 %v240, %v240
      %v277 = vunpack.c.l.b16 %v205
      %v278 = vunpack.c.l.b16 %v206
      %v279 = vunpack.c.l.b16 %v207
      %v280 = vunpack.c.l.b16 %v208
      %v281 = vunpack.c.l.b16 %v209
      %v282 = vunpack.c.l.b16 %v210
      %v283 = vunpack.c.l.b16 %v211
      %v284 = vunpack.c.l.b16 %v212
      %v285 = vunpack.c.l.b16 %v213
      %v286 = vunpack.c.l.b16 %v214
      %v287 = vunpack.c.l.b16 %v215
      %v288 = vunpack.c.l.b16 %v216
      %v289 = vunpack.c.l.b16 %v217
      %v290 = vunpack.c.l.b16 %v218
      %v291 = vunpack.c.l.b16 %v219
      %v292 = vunpack.c.l.b16 %v220
      %v293 = vunpack.c.l.b16 %v221
      %v294 = vunpack.c.l.b16 %v222
      %v295 = vunpack.c.l.b16 %v223
      %v296 = vunpack.c.l.b16 %v224
      %v297 = vunpack.c.l.b16 %v225
      %v298 = vunpack.c.l.b16 %v226
      %v299 = vunpack.c.l.b16 %v227
      %v300 = vunpack.c.l.b16 %v228
      %v301 = vunpack.c.l.b16 %v229
      %v302 = vunpack.c.l.b16 %v230
      %v303 = vunpack.c.l.b16 %v231
      %v304 = vunpack.c.l.b16 %v232
      %v305 = vunpack.c.l.b16 %v233
      %v306 = vunpack.c.l.b16 %v234
      %v307 = vunpack.c.l.b16 %v235
      %v308 = vunpack.c.l.b16 %v236
      %v309 = vpack.c.b16 %v278, %v277
      %v310 = vpack.c.b16 %v280, %v279
      %v311 = vpack.c.b16 %v282, %v281
      %v312 = vpack.c.b16 %v284, %v283
      %v313 = vpack.c.b16 %v286, %v285
      %v314 = vpack.c.b16 %v288, %v287
      %v315 = vpack.c.b16 %v290, %v289
      %v316 = vpack.c.b16 %v292, %v291
      %v317 = vpack.c.b16 %v294, %v293
      %v318 = vpack.c.b16 %v296, %v295
      %v319 = vpack.c.b16 %v298, %v297
      %v320 = vpack.c.b16 %v300, %v299
      %v321 = vpack.c.b16 %v302, %v301
      %v322 = vpack.c.b16 %v304, %v303
      %v323 = vpack.c.b16 %v306, %v305
      %v324 = vpack.c.b16 %v308, %v307
      %341 = vmatprep.subr.bf16.mxu0 0
      %342 = vmatpush1.bf16.msra.mxu0 %v309
      %343 = vmatprep.subr.bf16.mxu0 0
      %344 = vmatpush1.bf16.msra.mxu0 %v310
      %345 = vmatprep.subr.bf16.mxu0 0
      %346 = vmatpush1.bf16.msra.mxu0 %v311
      %347 = vmatprep.subr.bf16.mxu0 0
      %348 = vmatpush1.bf16.msra.mxu0 %v312
      %349 = vmatprep.subr.bf16.mxu0 0
      %350 = vmatpush1.bf16.msra.mxu0 %v313
      %351 = vmatprep.subr.bf16.mxu0 0
      %352 = vmatpush1.bf16.msra.mxu0 %v314
      %353 = vmatprep.subr.bf16.mxu0 0
      %354 = vmatpush1.bf16.msra.mxu0 %v315
      %355 = vmatprep.subr.bf16.mxu0 0
      %356 = vmatpush1.bf16.msra.mxu0 %v316
      %357 = vmatprep.subr.bf16.mxu0 0
      %358 = vmatpush1.bf16.msra.mxu0 %v317
      %359 = vmatprep.subr.bf16.mxu0 0
      %360 = vmatpush1.bf16.msra.mxu0 %v318
      %361 = vmatprep.subr.bf16.mxu0 0
      %362 = vmatpush1.bf16.msra.mxu0 %v319
      %363 = vmatprep.subr.bf16.mxu0 0
      %364 = vmatpush1.bf16.msra.mxu0 %v320
      %365 = vmatprep.subr.bf16.mxu0 0
      %366 = vmatpush1.bf16.msra.mxu0 %v321
      %367 = vmatprep.subr.bf16.mxu0 0
      %368 = vmatpush1.bf16.msra.mxu0 %v322
      %369 = vmatprep.subr.bf16.mxu0 0
      %370 = vmatpush1.bf16.msra.mxu0 %v323
      %371 = vmatprep.subr.bf16.mxu0 0
      %372 = vmatpush1.bf16.msra.mxu0 %v324
      %373 = vmatprep.mubr.bf16.mxu0 %v242
      %374 = vmatmul.mubr.bf16.gmra.mrb[0].mxu0 %v241
      %v375 = vpop.f32.mrb[0].mxu0
      %v376 = vadd.f32 %v237, %v375
      %v377 = vpop.f32.mrb[0].mxu0
      %v378 = vpop.f32.mrb[0].mxu0
      %v379 = vpop.f32.mrb[0].mxu0
      %380 = vdwg.mxu0
      %vm381 = vcmask 258048
      %382 = vst.msk [vmem:[%s202] sm:$0x1f] %vm381, %v376
      %p383 = scmp.lt.s32.totalorder %s18, 1
      %s384 = scalar_select %p383, %s18, 1
      %p385 = scmp.lt.s32.totalorder %s19, 0
      %s386 = scalar_select %p385, %s19, 0
      %s387 = sadd.s32 %s386, %s384
      %s388 = smul.addr %s387, 8
      %s389 = scalar_lea.vmem %s3, %s388
      // Predicated region
      $region33: #{tpu_custom_call.1} parent=31 // pred_check
        %p390 = pneg %p116
      $region34: #{tpu_custom_call.1} parent=31 // pred_check_branch
        %392 = sbr.rel (%p390) target = $region36
      $region35: #{tpu_custom_call.1} parent=31 // pred_region
        _
      $region36: #{tpu_custom_call.1} parent=31 // pred_fallthru
        _
    $region32: #{tpu_custom_call.1} parent=5 // pred_fallthru
      _
    %p393 = scmp.le.s32.totalorder 2, %s9
    // Predicated region
    $region37: #{tpu_custom_call.1} parent=5 // pred_check
      %p394 = pneg %p393
    $region38: #{tpu_custom_call.1} parent=5 // pred_check_branch
      %396 = sbr.rel (%p394) target = $region40
    $region39: #{tpu_custom_call.1} parent=5 // pred_region
      %s397 = ssub.s32 %s9, 2
      // Predicated region
      $region41: #{tpu_custom_call.1} parent=39 // pred_check
        %p398 = pneg %p122
      $region42: #{tpu_custom_call.1} parent=39 // pred_check_branch
        %400 = sbr.rel (%p398) target = $region44
      $region43: #{tpu_custom_call.1} parent=39 // pred_region
        %p401 = scmp.lt.s32.totalorder %s20, 1
        %s402 = scalar_select %p401, %s20, 1
        %p403 = scmp.lt.s32.totalorder %s21, 0
        %s404 = scalar_select %p403, %s21, 0
        %s405 = sadd.s32 %s404, %s402
        %s406 = smul.addr %s405, 8
        %s407 = scalar_lea.vmem %s3, %s406
      $region44: #{tpu_custom_call.1} parent=39 // pred_fallthru
        _
    $region40: #{tpu_custom_call.1} parent=5 // pred_fallthru
      _
  $region6: #{tpu_custom_call.1} parent=0 // loop_footer
    %s13 = sadd.s32 1, %s9
  $region7: #{tpu_custom_call.1} parent=0 // loop_footer_branch
    %8 = sbr.rel target = $region3
  $region8: #{tpu_custom_call.1} parent=0 // loop_exit
    _

</llo_original>
